<compile_context>
chip_gen: v6e
topology: v6e:2x2x1
jax: 0.10.0
libtpu: 0.0.40
codegen_flags: <defaults>
</compile_context>

<pallas_src>
import math
from functools import partial

import jax
import jax.numpy as jnp
from jax.experimental import pallas as pl
from jax.experimental.pallas import tpu as pltpu

_INV_SQRT2 = 1.0 / math.sqrt(2.0)


def _erf(x):
    # A&S 7.1.26 polynomial (|abs err| <= 1.5e-7); avoids relying on a Mosaic
    # erf lowering.  After the attention collapse GELU only touches (1, C)
    # elements per batch, so the VALU cost is negligible.
    a1, a2, a3, a4, a5 = (0.254829592, -0.284496736, 1.421413741,
                          -1.453152027, 1.061405429)
    p = 0.3275911
    s = jnp.where(x >= 0.0, 1.0, -1.0)
    ax = jnp.abs(x)
    t = 1.0 / (1.0 + p * ax)
    poly = ((((a5 * t + a4) * t + a3) * t + a2) * t + a1) * t
    return s * (1.0 - poly * jnp.exp(-ax * ax))


def _gelu(x):
    # nn.GELU() default (erf-based).
    return 0.5 * x * (1.0 + _erf(x * _INV_SQRT2))


def _pick_group(total, max_group=8, min_grid=2):
    """Largest divisor of `total` <= max_group that keeps grid >= min_grid."""
    if total <= 0:
        return 1
    cap = max(1, min(max_group, total,
                     total // min_grid if total >= min_grid else total))
    for g in range(cap, 0, -1):
        if total % g == 0:
            return g
    return 1


# ---------------------------------------------------------------------------
# Stage 1: fused to_k/to_v.  One (2N,N) @ (N,C) matmul per batch (k and v
# stacked along the output-row axis), x read in its native (B,N,C) layout so
# no XLA pre-transpose pass is needed.  Static unrolled loop over bt batches.
# ---------------------------------------------------------------------------
def _kv_kernel(bt, n_patches, x_ref, wkv_ref, bkv_ref, k_ref, v_ref):
    wkv = wkv_ref[...]                                    # (2N, N)  bf16
    bkv = bkv_ref[...]                                    # (2N, 1)  f32
    for bi in range(bt):
        xb = x_ref[bi].astype(wkv.dtype)                  # (N, C)   bf16
        kv = jnp.dot(wkv, xb, preferred_element_type=jnp.float32) + bkv  # (2N, C)
        k_ref[bi] = kv[:n_patches, :].astype(k_ref.dtype)     # kT[b, n_out, c]
        v_ref[bi] = kv[n_patches:, :].astype(v_ref.dtype)


# ---------------------------------------------------------------------------
# Stage 2: collapsed memory-bank attention + softmax + GELU + proj (row-sum
# outer product).  Blocks carry bt batches; per-head grouping is done with
# tiny 0/1 matrices E (C,H) / E^T (H,C), so no in-kernel reshape is needed.
# ---------------------------------------------------------------------------
def _attn_proj_kernel(use_proj, bt, k_ref, v_ref, memf_ref, e_ref, et_ref,
                      wpr_ref, bp_ref, o_ref):
    f32 = jnp.float32
    memf = memf_ref[...]                                  # (1, C)  f32, pre-scaled
    e_m = e_ref[...]                                      # (C, H)  bf16 (exact 0/1)
    et_m = et_ref[...]                                    # (H, C)  bf16 (exact 0/1)
    wpr = wpr_ref[...]                                    # (N, 1)  f32  (row sums of Wp)
    bp = bp_ref[...]                                      # (N, 1)  f32
    n_patches = k_ref.shape[1]
    chans = k_ref.shape[2]

    for bi in range(bt):
        k_nc = k_ref[bi]                                  # (N, C)  bf16
        v_nc = v_ref[bi].astype(f32)                      # (N, C)

        # Collapsed attention: all query rows are identical, so one query per
        # head:  s[n, h] = sum_d mem[h,d]*scale * k4[h,n,d]
        t = (k_nc.astype(f32) * memf).astype(k_nc.dtype)                   # (N, C)
        s = jnp.dot(t, e_m, preferred_element_type=f32)                    # (N, H)

        # softmax over the patch/key axis (per head)
        m = jnp.max(s, axis=0, keepdims=True)                              # (1, H)
        p = jnp.exp(s - m)                                                 # (N, H)
        denom = jnp.sum(p, axis=0, keepdims=True)                          # (1, H)
        attn = p * pl.reciprocal(denom, approx=True)                       # (N, H)

        # attn @ v collapsed to one output row per head, in channel space:
        attn_c = jnp.dot(attn.astype(et_m.dtype), et_m,
                         preferred_element_type=f32)                       # (N, C)
        o_row = jnp.sum(attn_c * v_nc, axis=0, keepdims=True)              # (1, C)
        o_row = _gelu(o_row)                                               # self.act

        if use_proj:
            # Every pre-proj row equals o_row, so proj collapses to:
            #   z[n, c] = rowsum(Wp)[n] * o_row[c] + bp[n]
            z = wpr * o_row + bp                                           # (N, C)
        else:
            z = jnp.broadcast_to(o_row, (n_patches, chans))
        o_ref[bi] = z.astype(o_ref.dtype)


def memory_bank_emb_att(x, params, num_heads=2, use_proj=True,
                        matmul_dtype=jnp.bfloat16):
    """Forward pass of Memory_Bank_Emb_Att.  x: (B, N, C) with N == num_patches."""
    B, N, C = x.shape
    H = num_heads
    assert C % H == 0
    D = C // H
    scale = float(N) ** (-0.5)                  # qk_scale=None -> num_patches^-0.5
    f32 = jnp.float32
    out_dtype = x.dtype

    # ---- tiny one-off host-side prep ----
    wkv = jnp.concatenate([params["wk"], params["wv"]], axis=0).astype(matmul_dtype)  # (2N, N)
    bkv = jnp.concatenate([params["bk"], params["bv"]], axis=0).reshape(2 * N, 1).astype(f32)
    # memory bank flattened onto the channel axis (c = h*D + d), pre-scaled.
    memf = (params["memory_bank"].reshape(1, C) * scale).astype(f32)
    # head one-hot grouping matrices (exact in bf16).
    head_of_c = jnp.arange(C, dtype=jnp.int32) // D
    heads = jnp.arange(H, dtype=jnp.int32)
    e_mat = (head_of_c[:, None] == heads[None, :]).astype(matmul_dtype)    # (C, H)
    et_mat = (heads[:, None] == head_of_c[None, :]).astype(matmul_dtype)   # (H, C)
    if use_proj:
        wp_rowsum = jnp.sum(params["wp"].astype(f32), axis=1).reshape(N, 1)
        bp = params["bp"].reshape(N, 1).astype(f32)
    else:
        wp_rowsum = jnp.zeros((N, 1), f32)
        bp = jnp.zeros((N, 1), f32)

    # ---- stage 1: fused to_k|to_v, native-layout x, bt1 batches per step ----
    bt1 = _pick_group(B, max_group=8)
    kT, vT = pl.pallas_call(
        partial(_kv_kernel, bt1, N),
        grid=(B // bt1,),
        in_specs=[
            pl.BlockSpec((bt1, N, C), lambda g: (g, 0, 0)),
            pl.BlockSpec((2 * N, N), lambda g: (0, 0)),
            pl.BlockSpec((2 * N, 1), lambda g: (0, 0)),
        ],
        out_specs=[
            pl.BlockSpec((bt1, N, C), lambda g: (g, 0, 0)),
            pl.BlockSpec((bt1, N, C), lambda g: (g, 0, 0)),
        ],
        out_shape=[
            jax.ShapeDtypeStruct((B, N, C), matmul_dtype),   # kT[b, n_out, c]
            jax.ShapeDtypeStruct((B, N, C), matmul_dtype),   # vT[b, n_out, c]
        ],
        compiler_params=pltpu.CompilerParams(dimension_semantics=("parallel",)),
    )(x, wkv, bkv)

    # ---- glue: torch `.view(B, N, H, D)` of the channel-major buffer ----
    # swapaxes -> (B, C, N) == torch's pre-view layout; reshape == the view.
    # XLA fuses both into ONE bf16 relayout copy per tensor.
    # TODO(synk): no reliably-lowerable in-kernel Mosaic reshape for this
    # lane-reinterleaving view, so it stays in XLA.
    k_view = jnp.swapaxes(kT, 1, 2).reshape(B, N, C)
    v_view = jnp.swapaxes(vT, 1, 2).reshape(B, N, C)

    # ---- stage 2: fused attention + softmax + GELU + proj, bt2 batches/step ----
    bt2 = _pick_group(B, max_group=8)
    out = pl.pallas_call(
        partial(_attn_proj_kernel, use_proj, bt2),
        grid=(B // bt2,),
        in_specs=[
            pl.BlockSpec((bt2, N, C), lambda g: (g, 0, 0)),
            pl.BlockSpec((bt2, N, C), lambda g: (g, 0, 0)),
            pl.BlockSpec((1, C), lambda g: (0, 0)),
            pl.BlockSpec((C, H), lambda g: (0, 0)),
            pl.BlockSpec((H, C), lambda g: (0, 0)),
            pl.BlockSpec((N, 1), lambda g: (0, 0)),
            pl.BlockSpec((N, 1), lambda g: (0, 0)),
        ],
        out_specs=pl.BlockSpec((bt2, N, C), lambda g: (g, 0, 0)),
        out_shape=jax.ShapeDtypeStruct((B, N, C), out_dtype),
        compiler_params=pltpu.CompilerParams(dimension_semantics=("parallel",)),
    )(k_view, v_view, memf, e_mat, et_mat, wp_rowsum, bp)
    return out


# ---------------------------------------------------------------------------
# Pure-JAX reference (direct transcription of the torch forward), for checking.
# ---------------------------------------------------------------------------
def _reference_forward(x, params, num_heads, use_proj):
    B, N, C = x.shape
    H = num_heads
    D = C // H
    scale = float(N) ** (-0.5)
    xt = jnp.swapaxes(x, 1, 2)                                   # (B, C, N)
    k = xt @ params["wk"].T + params["bk"]                       # (B, C, N)
    v = xt @ params["wv"].T + params["bv"]
    k4 = k.reshape(B, N, H, D).transpose(0, 2, 1, 3)             # (B, H, N, D)
    v4 = v.reshape(B, N, H, D).transpose(0, 2, 1, 3)
    mem = jnp.broadcast_to(params["memory_bank"][None, :, None, :], (B, H, N, D))
    logits = jnp.einsum("bhqd,bhkd->bhqk", mem, k4) * scale
    attn = jax.nn.softmax(logits, axis=-1)
    out = jnp.einsum("bhqk,bhkd->bhqd", attn, v4)
    out = jax.nn.gelu(out, approximate=False)
    y = out.transpose(0, 2, 1, 3).reshape(B, N, C)
    if use_proj:
        yt = jnp.swapaxes(y, 1, 2)
        z = yt @ params["wp"].T + params["bp"]
        y = jnp.swapaxes(z, 1, 2)
    return y


if __name__ == "__main__":
    key = jax.random.PRNGKey(0)
    # Shapes implied by the module: x is (B, N, C) with N == num_patches, C == dim.
    B, N, C = 2, 8, 32
    H = 2                       # num_heads
    D = C // H                  # head_dim

    keys = jax.random.split(key, 8)
    x = jax.random.normal(keys[0], (B, N, C), dtype=jnp.float32)

    bound = 1.0 / math.sqrt(N)  # nn.Linear default init bound (in_features = num_patches)
    params = {
        "wk": jax.random.uniform(keys[1], (N, N), jnp.float32, -bound, bound),
        "bk": jax.random.uniform(keys[2], (N,), jnp.float32, -bound, bound),
        "wv": jax.random.uniform(keys[3], (N, N), jnp.float32, -bound, bound),
        "bv": jax.random.uniform(keys[4], (N,), jnp.float32, -bound, bound),
        "wp": jax.random.uniform(keys[5], (N, N), jnp.float32, -bound, bound),
        "bp": jax.random.uniform(keys[6], (N,), jnp.float32, -bound, bound),
        "memory_bank": 0.02 * jax.random.normal(keys[7], (H, D), jnp.float32),
    }

    fwd = jax.jit(partial(memory_bank_emb_att, num_heads=H, use_proj=True))
    y = jax.block_until_ready(fwd(x, params))

    assert y.shape == (B, N, C), y.shape
    assert bool(jnp.all(jnp.isfinite(y)))

    # Loose tolerance: the Pallas path uses bf16 MXU operands / bf16
    # intermediates, the reference is full f32.
    y_ref = _reference_forward(x, params, num_heads=H, use_proj=True)
    assert bool(jnp.allclose(y, y_ref, atol=5e-2, rtol=5e-2)), (
        float(jnp.max(jnp.abs(y - y_ref))))

    print("KERNEL_OK")
</pallas_src>

<mosaic_0001>
module attributes {stable_mosaic.version = 11 : i64} {
  func.func @_kv_kernel(%arg0: i32, %arg1: memref<1x8x32xf32, #tpu.memory_space<vmem>>, %arg2: memref<16x8xbf16, #tpu.memory_space<vmem>>, %arg3: memref<16x1xf32, #tpu.memory_space<vmem>>, %arg4: memref<1x8x32xbf16, #tpu.memory_space<vmem>>, %arg5: memref<1x8x32xbf16, #tpu.memory_space<vmem>>) attributes {dimension_semantics = [#tpu.dimension_semantics<parallel>], iteration_bounds = array<i64: 2>, scalar_prefetch = 0 : i64, scratch_operands = 0 : i64, tpu.core_type = #tpu.core_type<tc>, window_params = [{transform_indices = @transform_0, window_bounds = array<i64: 1, 8, 32>}, {pipeline_mode = #tpu.pipeline_mode<synchronous>, transform_indices = @transform_1, window_bounds = array<i64: 16, 8>}, {pipeline_mode = #tpu.pipeline_mode<synchronous>, transform_indices = @transform_2, window_bounds = array<i64: 16, 1>}, {transform_indices = @transform_3, window_bounds = array<i64: 1, 8, 32>}, {transform_indices = @transform_4, window_bounds = array<i64: 1, 8, 32>}]} {
    %c0 = arith.constant 0 : index
    %c0_0 = arith.constant 0 : index
    %0 = vector.load %arg2[%c0, %c0_0] : memref<16x8xbf16, #tpu.memory_space<vmem>>, vector<16x8xbf16>
    %c0_1 = arith.constant 0 : index
    %c0_2 = arith.constant 0 : index
    %1 = vector.load %arg3[%c0_1, %c0_2] : memref<16x1xf32, #tpu.memory_space<vmem>>, vector<16x1xf32>
    %c0_3 = arith.constant 0 : index
    %c0_4 = arith.constant 0 : index
    %c0_5 = arith.constant 0 : index
    %2 = vector.load %arg1[%c0_3, %c0_4, %c0_5] : memref<1x8x32xf32, #tpu.memory_space<vmem>>, vector<1x8x32xf32>
    %3 = vector.shape_cast %2 : vector<1x8x32xf32> to vector<8x32xf32>
    %4 = arith.truncf %3 : vector<8x32xf32> to vector<8x32xbf16>
    %cst = arith.constant dense<0.000000e+00> : vector<16x32xf32>
    %5 = tpu.matmul %0, %4, %cst {dimension_numbers = #tpu.dot_dimension_numbers<[1], [0], [0], [1], [0, 0, 1, 1], [], []>} : vector<16x8xbf16>, vector<8x32xbf16>, vector<16x32xf32> -> vector<16x32xf32>
    %6 = vector.broadcast %1 : vector<16x1xf32> to vector<16x32xf32>
    %7 = arith.addf %5, %6 : vector<16x32xf32>
    %8 = vector.extract_strided_slice %7 {offsets = [0, 0], sizes = [8, 32], strides = [1, 1]} : vector<16x32xf32> to vector<8x32xf32>
    %9 = arith.truncf %8 : vector<8x32xf32> to vector<8x32xbf16>
    %c0_6 = arith.constant 0 : index
    %c0_7 = arith.constant 0 : index
    %c0_8 = arith.constant 0 : index
    %10 = vector.load %arg4[%c0_6, %c0_7, %c0_8] : memref<1x8x32xbf16, #tpu.memory_space<vmem>>, vector<1x8x32xbf16>
    %11 = vector.shape_cast %10 : vector<1x8x32xbf16> to vector<8x32xbf16>
    %12 = vector.shape_cast %9 : vector<8x32xbf16> to vector<1x8x32xbf16>
    tpu.vector_store %arg4[%c0_6, %c0_7, %c0_8], %12 {strides = array<i32>} : memref<1x8x32xbf16, #tpu.memory_space<vmem>>, vector<1x8x32xbf16>,
    %13 = vector.extract_strided_slice %7 {offsets = [8, 0], sizes = [8, 32], strides = [1, 1]} : vector<16x32xf32> to vector<8x32xf32>
    %14 = arith.truncf %13 : vector<8x32xf32> to vector<8x32xbf16>
    %c0_9 = arith.constant 0 : index
    %c0_10 = arith.constant 0 : index
    %c0_11 = arith.constant 0 : index
    %15 = vector.load %arg5[%c0_9, %c0_10, %c0_11] : memref<1x8x32xbf16, #tpu.memory_space<vmem>>, vector<1x8x32xbf16>
    %16 = vector.shape_cast %15 : vector<1x8x32xbf16> to vector<8x32xbf16>
    %17 = vector.shape_cast %14 : vector<8x32xbf16> to vector<1x8x32xbf16>
    tpu.vector_store %arg5[%c0_9, %c0_10, %c0_11], %17 {strides = array<i32>} : memref<1x8x32xbf16, #tpu.memory_space<vmem>>, vector<1x8x32xbf16>,
    return
  }
  func.func @transform_0(%arg0: i32) -> (i32, i32, i32) {
    %c0_i32 = arith.constant 0 : i32
    %c0_i32_0 = arith.constant 0 : i32
    %c0_i32_1 = arith.constant 0 : i32
    return %arg0, %c0_i32, %c0_i32_0 : i32, i32, i32
  }
  func.func @transform_1(%arg0: i32) -> (i32, i32) {
    %c0_i32 = arith.constant 0 : i32
    %c0_i32_0 = arith.constant 0 : i32
    %c0_i32_1 = arith.constant 0 : i32
    return %c0_i32, %c0_i32_0 : i32, i32
  }
  func.func @transform_2(%arg0: i32) -> (i32, i32) {
    %c0_i32 = arith.constant 0 : i32
    %c0_i32_0 = arith.constant 0 : i32
    %c0_i32_1 = arith.constant 0 : i32
    return %c0_i32, %c0_i32_0 : i32, i32
  }
  func.func @transform_3(%arg0: i32) -> (i32, i32, i32) {
    %c0_i32 = arith.constant 0 : i32
    %c0_i32_0 = arith.constant 0 : i32
    %c0_i32_1 = arith.constant 0 : i32
    return %arg0, %c0_i32, %c0_i32_0 : i32, i32, i32
  }
  func.func @transform_4(%arg0: i32) -> (i32, i32, i32) {
    %c0_i32 = arith.constant 0 : i32
    %c0_i32_0 = arith.constant 0 : i32
    %c0_i32_1 = arith.constant 0 : i32
    return %arg0, %c0_i32, %c0_i32_0 : i32, i32, i32
  }
}

module attributes {stable_mosaic.version = 11 : i64} {
  func.func @_attn_proj_kernel(%arg0: i32, %arg1: memref<1x8x32xbf16, #tpu.memory_space<vmem>>, %arg2: memref<1x8x32xbf16, #tpu.memory_space<vmem>>, %arg3: memref<1x32xf32, #tpu.memory_space<vmem>>, %arg4: memref<32x2xbf16, #tpu.memory_space<vmem>>, %arg5: memref<2x32xbf16, #tpu.memory_space<vmem>>, %arg6: memref<8x1xf32, #tpu.memory_space<vmem>>, %arg7: memref<8x1xf32, #tpu.memory_space<vmem>>, %arg8: memref<1x8x32xf32, #tpu.memory_space<vmem>>) attributes {dimension_semantics = [#tpu.dimension_semantics<parallel>], iteration_bounds = array<i64: 2>, scalar_prefetch = 0 : i64, scratch_operands = 0 : i64, tpu.core_type = #tpu.core_type<tc>, window_params = [{transform_indices = @transform_0, window_bounds = array<i64: 1, 8, 32>}, {transform_indices = @transform_1, window_bounds = array<i64: 1, 8, 32>}, {pipeline_mode = #tpu.pipeline_mode<synchronous>, transform_indices = @transform_2, window_bounds = array<i64: 1, 32>}, {pipeline_mode = #tpu.pipeline_mode<synchronous>, transform_indices = @transform_3, window_bounds = array<i64: 32, 2>}, {pipeline_mode = #tpu.pipeline_mode<synchronous>, transform_indices = @transform_4, window_bounds = array<i64: 2, 32>}, {pipeline_mode = #tpu.pipeline_mode<synchronous>, transform_indices = @transform_5, window_bounds = array<i64: 8, 1>}, {pipeline_mode = #tpu.pipeline_mode<synchronous>, transform_indices = @transform_6, window_bounds = array<i64: 8, 1>}, {transform_indices = @transform_7, window_bounds = array<i64: 1, 8, 32>}]} {
    %c0 = arith.constant 0 : index
    %c0_0 = arith.constant 0 : index
    %0 = vector.load %arg3[%c0, %c0_0] : memref<1x32xf32, #tpu.memory_space<vmem>>, vector<1x32xf32>
    %c0_1 = arith.constant 0 : index
    %c0_2 = arith.constant 0 : index
    %1 = vector.load %arg4[%c0_1, %c0_2] : memref<32x2xbf16, #tpu.memory_space<vmem>>, vector<32x2xbf16>
    %c0_3 = arith.constant 0 : index
    %c0_4 = arith.constant 0 : index
    %2 = vector.load %arg5[%c0_3, %c0_4] : memref<2x32xbf16, #tpu.memory_space<vmem>>, vector<2x32xbf16>
    %c0_5 = arith.constant 0 : index
    %c0_6 = arith.constant 0 : index
    %3 = vector.load %arg6[%c0_5, %c0_6] : memref<8x1xf32, #tpu.memory_space<vmem>>, vector<8x1xf32>
    %c0_7 = arith.constant 0 : index
    %c0_8 = arith.constant 0 : index
    %4 = vector.load %arg7[%c0_7, %c0_8] : memref<8x1xf32, #tpu.memory_space<vmem>>, vector<8x1xf32>
    %c0_9 = arith.constant 0 : index
    %c0_10 = arith.constant 0 : index
    %c0_11 = arith.constant 0 : index
    %5 = vector.load %arg1[%c0_9, %c0_10, %c0_11] : memref<1x8x32xbf16, #tpu.memory_space<vmem>>, vector<1x8x32xbf16>
    %6 = vector.shape_cast %5 : vector<1x8x32xbf16> to vector<8x32xbf16>
    %c0_12 = arith.constant 0 : index
    %c0_13 = arith.constant 0 : index
    %c0_14 = arith.constant 0 : index
    %7 = vector.load %arg2[%c0_12, %c0_13, %c0_14] : memref<1x8x32xbf16, #tpu.memory_space<vmem>>, vector<1x8x32xbf16>
    %8 = vector.shape_cast %7 : vector<1x8x32xbf16> to vector<8x32xbf16>
    %9 = arith.extf %8 : vector<8x32xbf16> to vector<8x32xf32>
    %10 = arith.extf %6 : vector<8x32xbf16> to vector<8x32xf32>
    %11 = vector.broadcast %0 : vector<1x32xf32> to vector<8x32xf32>
    %12 = arith.mulf %10, %11 : vector<8x32xf32>
    %13 = arith.truncf %12 : vector<8x32xf32> to vector<8x32xbf16>
    %cst = arith.constant dense<0.000000e+00> : vector<8x2xf32>
    %14 = tpu.matmul %13, %1, %cst {dimension_numbers = #tpu.dot_dimension_numbers<[1], [0], [0], [1], [0, 0, 1, 1], [], []>} : vector<8x32xbf16>, vector<32x2xbf16>, vector<8x2xf32> -> vector<8x2xf32>
    %cst_15 = arith.constant dense<0xFF800000> : vector<2xf32>
    %15 = vector.multi_reduction <maximumf>, %14, %cst_15 [0] : vector<8x2xf32> to vector<2xf32>
    %16 = vector.shape_cast %15 : vector<2xf32> to vector<1x2xf32>
    %17 = vector.broadcast %16 : vector<1x2xf32> to vector<8x2xf32>
    %18 = arith.subf %14, %17 : vector<8x2xf32>
    %19 = math.exp %18 : vector<8x2xf32>
    %cst_16 = arith.constant dense<0.000000e+00> : vector<2xf32>
    %20 = vector.multi_reduction <add>, %19, %cst_16 [0] : vector<8x2xf32> to vector<2xf32>
    %21 = vector.shape_cast %20 : vector<2xf32> to vector<1x2xf32>
    %22 = tpu.reciprocal %21 {approx = true} : vector<1x2xf32> -> vector<1x2xf32>
    %23 = vector.broadcast %22 : vector<1x2xf32> to vector<8x2xf32>
    %24 = arith.mulf %19, %23 : vector<8x2xf32>
    %25 = arith.truncf %24 : vector<8x2xf32> to vector<8x2xbf16>
    %cst_17 = arith.constant dense<0.000000e+00> : vector<8x32xf32>
    %26 = tpu.matmul %25, %2, %cst_17 {dimension_numbers = #tpu.dot_dimension_numbers<[1], [0], [0], [1], [0, 0, 1, 1], [], []>} : vector<8x2xbf16>, vector<2x32xbf16>, vector<8x32xf32> -> vector<8x32xf32>
    %27 = arith.mulf %26, %9 : vector<8x32xf32>
    %cst_18 = arith.constant dense<0.000000e+00> : vector<32xf32>
    %28 = vector.multi_reduction <add>, %27, %cst_18 [0] : vector<8x32xf32> to vector<32xf32>
    %29 = vector.shape_cast %28 : vector<32xf32> to vector<1x32xf32>
    %cst_19 = arith.constant 5.000000e-01 : f32
    %30 = vector.broadcast %cst_19 : f32 to vector<1x32xf32>
    %31 = arith.mulf %30, %29 : vector<1x32xf32>
    %cst_20 = arith.constant 0.707106769 : f32
    %32 = vector.broadcast %cst_20 : f32 to vector<1x32xf32>
    %33 = arith.mulf %29, %32 : vector<1x32xf32>
    %cst_21 = arith.constant 0.000000e+00 : f32
    %34 = vector.broadcast %cst_21 : f32 to vector<1x32xf32>
    %35 = arith.cmpf oge, %33, %34 : vector<1x32xf32>
    %cst_22 = arith.constant 1.000000e+00 : f32
    %cst_23 = arith.constant -1.000000e+00 : f32
    %36 = vector.broadcast %cst_22 : f32 to vector<1x32xf32>
    %37 = vector.broadcast %cst_23 : f32 to vector<1x32xf32>
    %38 = arith.select %35, %36, %37 : vector<1x32xi1>, vector<1x32xf32>
    %39 = math.absf %33 : vector<1x32xf32>
    %cst_24 = arith.constant 0.327591091 : f32
    %40 = vector.broadcast %cst_24 : f32 to vector<1x32xf32>
    %41 = arith.mulf %40, %39 : vector<1x32xf32>
    %cst_25 = arith.constant 1.000000e+00 : f32
    %42 = vector.broadcast %cst_25 : f32 to vector<1x32xf32>
    %43 = arith.addf %42, %41 : vector<1x32xf32>
    %cst_26 = arith.constant 1.000000e+00 : f32
    %44 = vector.broadcast %cst_26 : f32 to vector<1x32xf32>
    %45 = arith.divf %44, %43 : vector<1x32xf32>
    %cst_27 = arith.constant 1.06140542 : f32
    %46 = vector.broadcast %cst_27 : f32 to vector<1x32xf32>
    %47 = arith.mulf %46, %45 : vector<1x32xf32>
    %cst_28 = arith.constant -1.45315206 : f32
    %48 = vector.broadcast %cst_28 : f32 to vector<1x32xf32>
    %49 = arith.addf %47, %48 : vector<1x32xf32>
    %50 = arith.mulf %49, %45 : vector<1x32xf32>
    %cst_29 = arith.constant 1.42141378 : f32
    %51 = vector.broadcast %cst_29 : f32 to vector<1x32xf32>
    %52 = arith.addf %50, %51 : vector<1x32xf32>
    %53 = arith.mulf %52, %45 : vector<1x32xf32>
    %cst_30 = arith.constant -0.284496725 : f32
    %54 = vector.broadcast %cst_30 : f32 to vector<1x32xf32>
    %55 = arith.addf %53, %54 : vector<1x32xf32>
    %56 = arith.mulf %55, %45 : vector<1x32xf32>
    %cst_31 = arith.constant 0.254829586 : f32
    %57 = vector.broadcast %cst_31 : f32 to vector<1x32xf32>
    %58 = arith.addf %56, %57 : vector<1x32xf32>
    %59 = arith.mulf %58, %45 : vector<1x32xf32>
    %cst_32 = arith.constant 0.000000e+00 : f32
    %60 = vector.broadcast %cst_32 : f32 to vector<1x32xf32>
    %61 = arith.subf %60, %39 : vector<1x32xf32>
    %62 = arith.mulf %61, %39 : vector<1x32xf32>
    %63 = math.exp %62 : vector<1x32xf32>
    %64 = arith.mulf %59, %63 : vector<1x32xf32>
    %cst_33 = arith.constant 1.000000e+00 : f32
    %65 = vector.broadcast %cst_33 : f32 to vector<1x32xf32>
    %66 = arith.subf %65, %64 : vector<1x32xf32>
    %67 = arith.mulf %38, %66 : vector<1x32xf32>
    %cst_34 = arith.constant 1.000000e+00 : f32
    %68 = vector.broadcast %cst_34 : f32 to vector<1x32xf32>
    %69 = arith.addf %68, %67 : vector<1x32xf32>
    %70 = arith.mulf %31, %69 : vector<1x32xf32>
    %71 = vector.broadcast %3 : vector<8x1xf32> to vector<8x32xf32>
    %72 = vector.broadcast %70 : vector<1x32xf32> to vector<8x32xf32>
    %73 = arith.mulf %71, %72 : vector<8x32xf32>
    %74 = vector.broadcast %4 : vector<8x1xf32> to vector<8x32xf32>
    %75 = arith.addf %73, %74 : vector<8x32xf32>
    %c0_35 = arith.constant 0 : index
    %c0_36 = arith.constant 0 : index
    %c0_37 = arith.constant 0 : index
    %76 = vector.load %arg8[%c0_35, %c0_36, %c0_37] : memref<1x8x32xf32, #tpu.memory_space<vmem>>, vector<1x8x32xf32>
    %77 = vector.shape_cast %76 : vector<1x8x32xf32> to vector<8x32xf32>
    %78 = vector.shape_cast %75 : vector<8x32xf32> to vector<1x8x32xf32>
    tpu.vector_store %arg8[%c0_35, %c0_36, %c0_37], %78 {strides = array<i32>} : memref<1x8x32xf32, #tpu.memory_space<vmem>>, vector<1x8x32xf32>,
    return
  }
  func.func @transform_0(%arg0: i32) -> (i32, i32, i32) {
    %c0_i32 = arith.constant 0 : i32
    %c0_i32_0 = arith.constant 0 : i32
    %c0_i32_1 = arith.constant 0 : i32
    return %arg0, %c0_i32, %c0_i32_0 : i32, i32, i32
  }
  func.func @transform_1(%arg0: i32) -> (i32, i32, i32) {
    %c0_i32 = arith.constant 0 : i32
    %c0_i32_0 = arith.constant 0 : i32
    %c0_i32_1 = arith.constant 0 : i32
    return %arg0, %c0_i32, %c0_i32_0 : i32, i32, i32
  }
  func.func @transform_2(%arg0: i32) -> (i32, i32) {
    %c0_i32 = arith.constant 0 : i32
    %c0_i32_0 = arith.constant 0 : i32
    %c0_i32_1 = arith.constant 0 : i32
    return %c0_i32, %c0_i32_0 : i32, i32
  }
  func.func @transform_3(%arg0: i32) -> (i32, i32) {
    %c0_i32 = arith.constant 0 : i32
    %c0_i32_0 = arith.constant 0 : i32
    %c0_i32_1 = arith.constant 0 : i32
    return %c0_i32, %c0_i32_0 : i32, i32
  }
  func.func @transform_4(%arg0: i32) -> (i32, i32) {
    %c0_i32 = arith.constant 0 : i32
    %c0_i32_0 = arith.constant 0 : i32
    %c0_i32_1 = arith.constant 0 : i32
    return %c0_i32, %c0_i32_0 : i32, i32
  }
  func.func @transform_5(%arg0: i32) -> (i32, i32) {
    %c0_i32 = arith.constant 0 : i32
    %c0_i32_0 = arith.constant 0 : i32
    %c0_i32_1 = arith.constant 0 : i32
    return %c0_i32, %c0_i32_0 : i32, i32
  }
  func.func @transform_6(%arg0: i32) -> (i32, i32) {
    %c0_i32 = arith.constant 0 : i32
    %c0_i32_0 = arith.constant 0 : i32
    %c0_i32_1 = arith.constant 0 : i32
    return %c0_i32, %c0_i32_0 : i32, i32
  }
  func.func @transform_7(%arg0: i32) -> (i32, i32, i32) {
    %c0_i32 = arith.constant 0 : i32
    %c0_i32_0 = arith.constant 0 : i32
    %c0_i32_1 = arith.constant 0 : i32
    return %arg0, %c0_i32, %c0_i32_0 : i32, i32, i32
  }
}

</mosaic_0001>

<llo_original>
// kernel: memory_bank_emb_att.2
$region0: #{memory_bank_emb_att.2}
  #allocation0 [shape = 'u32[]', space=smem, size = 0x4, offset = 0x4, fixed_abs, tag = 'smem constant byte address 0x4 - core index']
  #allocation1 [shape = 'u32[144,128]{1,0:T(1,128)}', space=vmem, size = 0x12000, scoped, tag = 'internal scratch']
  %s0 = inlined_call_operand.vmem [shape: f32[2,8,32], index: 0, kind: input, shape index: {}]
  %s1 = inlined_call_operand.vmem [shape: bf16[16,8], index: 1, kind: input, shape index: {}]
  %s2 = inlined_call_operand.vmem [shape: f32[16,1], index: 2, kind: input, shape index: {}]
  %s3 = inlined_call_operand.vmem [shape: bf16[2,8,32], index: 3, kind: output, shape index: {0}]
  %s4 = inlined_call_operand.vmem [shape: bf16[2,8,32], index: 4, kind: output, shape index: {1}]
  %5 = xla_tuple %s3, %s4
  %s6 = sld [smem:[#allocation0]]
  $region53: #{memory_bank_emb_att.2} parent=0
    _
  %s8 = ssub.s32 1, %s6
  %s9 = scalar_select 0, %s8, %s6
  loop: start=0, step=1, limit=4
  $region2: #{memory_bank_emb_att.2} parent=0 // loop_pre_header
    _
  $region3: #{memory_bank_emb_att.2} parent=0 // loop_header
    %s11 = sphi 0, %s15
    %p12 = scmp.ge.s32.totalorder %s11, 4
    %s21 = sphi 0, %s23
    %s24 = sphi 0, %s21
    %s25 = sphi 0, %s24
    %s41 = sphi 0, %s25
    %s45 = sphi 0, %s45
    %s47 = sphi 0, %s45
    %s48 = sphi 0, %s47
    %s62 = sphi 0, %s48
    %s66 = sphi 0, %s66
    %s68 = sphi 0, %s66
    %s69 = sphi 0, %s68
    %s83 = sphi 0, %s69
    %s89 = sphi 0, %s91
    %s92 = sphi 0, %s89
    %s93 = sphi 0, %s92
    %s109 = sphi 0, %s93
    %s115 = sphi 0, %s117
    %s118 = sphi 0, %s115
    %s119 = sphi 0, %s118
    %s135 = sphi 0, %s119
  $region4: #{memory_bank_emb_att.2} parent=0 // loop_header_branch
    %14 = sbr.rel (%p12) target = $region8
  $region5: #{memory_bank_emb_att.2} parent=0 // loop_body
    %s16 = ssub.s32 %s11, 1
    %s17 = ssub.s32 %s11, 2
    %s18 = sadd.s32 %s11, 1
    %s19 = ssub.s32 %s11, %s18
    %p20 = scmp.eq.s32.totalorder %s19, 0
    %s22 = sadd.s32 %s21, 1
    %s23 = scalar_select %p20, %s21, %s22
    %p26 = pneg %p20
    %p27 = scmp.eq.s32.totalorder %s11, 1
    %p28 = por %p26, %p27
    %p29 = scmp.ne.s32.totalorder %s21, %s24
    %p30 = scmp.eq.s32.totalorder %s11, 0
    %p31 = por %p29, %p30
    %p32 = scmp.ne.s32.totalorder %s21, %s24
    %p33 = scmp.eq.s32.totalorder %s16, 1
    %p34 = por %p32, %p33
    %p35 = scmp.ne.s32.totalorder %s24, %s25
    %p36 = scmp.eq.s32.totalorder %s16, 0
    %p37 = por %p35, %p36
    %p38 = scmp.ne.s32.totalorder %s24, %s25
    %p39 = scmp.eq.s32.totalorder %s17, 1
    %p40 = por %p38, %p39
    %p42 = scmp.ne.s32.totalorder %s25, %s41
    %p43 = scmp.eq.s32.totalorder %s17, 0
    %p44 = por %p42, %p43
    %s46 = sadd.s32 %s45, 1
    %p49 = scmp.eq.s32.totalorder %s11, 1
    %p50 = scmp.ne.s32.totalorder %s45, %s47
    %p51 = scmp.eq.s32.totalorder %s11, 0
    %p52 = por %p50, %p51
    %p53 = scmp.ne.s32.totalorder %s45, %s47
    %p54 = scmp.eq.s32.totalorder %s16, 1
    %p55 = por %p53, %p54
    %p56 = scmp.ne.s32.totalorder %s47, %s48
    %p57 = scmp.eq.s32.totalorder %s16, 0
    %p58 = por %p56, %p57
    %p59 = scmp.ne.s32.totalorder %s47, %s48
    %p60 = scmp.eq.s32.totalorder %s17, 1
    %p61 = por %p59, %p60
    %p63 = scmp.ne.s32.totalorder %s48, %s62
    %p64 = scmp.eq.s32.totalorder %s17, 0
    %p65 = por %p63, %p64
    %s67 = sadd.s32 %s66, 1
    %p70 = scmp.eq.s32.totalorder %s11, 1
    %p71 = scmp.ne.s32.totalorder %s66, %s68
    %p72 = scmp.eq.s32.totalorder %s11, 0
    %p73 = por %p71, %p72
    %p74 = scmp.ne.s32.totalorder %s66, %s68
    %p75 = scmp.eq.s32.totalorder %s16, 1
    %p76 = por %p74, %p75
    %p77 = scmp.ne.s32.totalorder %s68, %s69
    %p78 = scmp.eq.s32.totalorder %s16, 0
    %p79 = por %p77, %p78
    %p80 = scmp.ne.s32.totalorder %s68, %s69
    %p81 = scmp.eq.s32.totalorder %s17, 1
    %p82 = por %p80, %p81
    %p84 = scmp.ne.s32.totalorder %s69, %s83
    %p85 = scmp.eq.s32.totalorder %s17, 0
    %p86 = por %p84, %p85
    %s87 = ssub.s32 %s11, %s18
    %p88 = scmp.eq.s32.totalorder %s87, 0
    %s90 = sadd.s32 %s89, 1
    %s91 = scalar_select %p88, %s89, %s90
    %p94 = pneg %p88
    %p95 = scmp.eq.s32.totalorder %s11, 1
    %p96 = por %p94, %p95
    %p97 = scmp.ne.s32.totalorder %s89, %s92
    %p98 = scmp.eq.s32.totalorder %s11, 0
    %p99 = por %p97, %p98
    %p100 = scmp.ne.s32.totalorder %s89, %s92
    %p101 = scmp.eq.s32.totalorder %s16, 1
    %p102 = por %p100, %p101
    %p103 = scmp.ne.s32.totalorder %s92, %s93
    %p104 = scmp.eq.s32.totalorder %s16, 0
    %p105 = por %p103, %p104
    %p106 = scmp.ne.s32.totalorder %s92, %s93
    %p107 = scmp.eq.s32.totalorder %s17, 1
    %p108 = por %p106, %p107
    %p110 = scmp.ne.s32.totalorder %s93, %s109
    %p111 = scmp.eq.s32.totalorder %s17, 0
    %p112 = por %p110, %p111
    %s113 = ssub.s32 %s11, %s18
    %p114 = scmp.eq.s32.totalorder %s113, 0
    %s116 = sadd.s32 %s115, 1
    %s117 = scalar_select %p114, %s115, %s116
    %p120 = pneg %p114
    %p121 = scmp.eq.s32.totalorder %s11, 1
    %p122 = por %p120, %p121
    %p123 = scmp.ne.s32.totalorder %s115, %s118
    %p124 = scmp.eq.s32.totalorder %s11, 0
    %p125 = por %p123, %p124
    %p126 = scmp.ne.s32.totalorder %s115, %s118
    %p127 = scmp.eq.s32.totalorder %s16, 1
    %p128 = por %p126, %p127
    %p129 = scmp.ne.s32.totalorder %s118, %s119
    %p130 = scmp.eq.s32.totalorder %s16, 0
    %p131 = por %p129, %p130
    %p132 = scmp.ne.s32.totalorder %s118, %s119
    %p133 = scmp.eq.s32.totalorder %s17, 1
    %p134 = por %p132, %p133
    %p136 = scmp.ne.s32.totalorder %s119, %s135
    %p137 = scmp.eq.s32.totalorder %s17, 0
    %p138 = por %p136, %p137
    %p139 = scmp.le.s32.totalorder 1, %s11
    %p140 = scmp.lt.s32.totalorder %s11, 3
    %p141 = pnand %p139, %p140
    %p142 = pneg %p141
    // Predicated region
    $region9: #{memory_bank_emb_att.2} parent=5 // pred_check
      _
    $region10: #{memory_bank_emb_att.2} parent=5 // pred_check_branch
      %144 = sbr.rel (%p141) target = $region12
    $region11: #{memory_bank_emb_att.2} parent=5 // pred_region
      %s145 = ssub.s32 %s11, 1
      // Predicated region
      $region13: #{memory_bank_emb_att.2} parent=11 // pred_check
        %p146 = pneg %p58
      $region14: #{memory_bank_emb_att.2} parent=11 // pred_check_branch
        %148 = sbr.rel (%p146) target = $region16
      $region15: #{memory_bank_emb_att.2} parent=11 // pred_region
        _
      $region16: #{memory_bank_emb_att.2} parent=11 // pred_fallthru
        _
      // Predicated region
      $region17: #{memory_bank_emb_att.2} parent=11 // pred_check
        %p149 = pneg %p79
      $region18: #{memory_bank_emb_att.2} parent=11 // pred_check_branch
        %151 = sbr.rel (%p149) target = $region20
      $region19: #{memory_bank_emb_att.2} parent=11 // pred_region
        _
      $region20: #{memory_bank_emb_att.2} parent=11 // pred_fallthru
        _
    $region12: #{memory_bank_emb_att.2} parent=5 // pred_fallthru
      _
    %p152 = scmp.lt.s32.totalorder %s11, 2
    // Predicated region
    $region21: #{memory_bank_emb_att.2} parent=5 // pred_check
      %p153 = pneg %p152
    $region22: #{memory_bank_emb_att.2} parent=5 // pred_check_branch
      %155 = sbr.rel (%p153) target = $region24
    $region23: #{memory_bank_emb_att.2} parent=5 // pred_region
      // Predicated region
      $region25: #{memory_bank_emb_att.2} parent=23 // pred_check
        %p156 = pneg %p31
      $region26: #{memory_bank_emb_att.2} parent=23 // pred_check_branch
        %158 = sbr.rel (%p156) target = $region28
      $region27: #{memory_bank_emb_att.2} parent=23 // pred_region
        %p159 = scmp.lt.s32.totalorder %s11, 1
        %s160 = scalar_select %p159, %s11, 1
        %s161 = smul.addr %s160, 8
        %s162 = scalar_lea.vmem %s0, %s161
      $region28: #{memory_bank_emb_att.2} parent=23 // pred_fallthru
        _
    $region24: #{memory_bank_emb_att.2} parent=5 // pred_fallthru
      _
    %p163 = scmp.le.s32.totalorder 1, %s11
    %p164 = scmp.lt.s32.totalorder %s11, 3
    %p165 = pnand %p163, %p164
    %p166 = pneg %p165
    // Predicated region
    $region29: #{memory_bank_emb_att.2} parent=5 // pred_check
      _
    $region30: #{memory_bank_emb_att.2} parent=5 // pred_check_branch
      %168 = sbr.rel (%p165) target = $region32
    $region31: #{memory_bank_emb_att.2} parent=5 // pred_region
      %s169 = ssub.s32 %s11, 1
      %p170 = scmp.lt.s32.totalorder %s16, 1
      %s171 = scalar_select %p170, %s16, 1
      %s172 = smul.addr %s171, 8
      %s173 = scalar_lea.vmem %s0, %s172
      %p174 = pneg %p37
      %p175 = pneg %p34
      %p176 = pneg %p58
      %p177 = pneg %p55
      %p178 = pneg %p79
      %p179 = pneg %p76
      %p180 = pneg %p105
      %p181 = pneg %p102
      %p182 = scmp.lt.s32.totalorder %s16, 1
      %s183 = scalar_select %p182, %s16, 1
      %s184 = smul.addr %s183, 4
      %s185 = scalar_lea.vmem %s3, %s184
      %p186 = pneg %p131
      %p187 = pneg %p128
      %p188 = scmp.lt.s32.totalorder %s16, 1
      %s189 = scalar_select %p188, %s16, 1
      %s190 = smul.addr %s189, 4
      %s191 = scalar_lea.vmem %s4, %s190
      %p192 = scmp.lt.s32.totalorder %s16, 1
      %s193 = scalar_select %p192, %s16, 1
      %s194 = smul.addr %s193, 8
      %s195 = scalar_lea.vmem %s0, %s194
      %p196 = scmp.lt.s32.totalorder %s16, 1
      %s197 = scalar_select %p196, %s16, 1
      %s198 = smul.addr %s197, 4
      %s199 = scalar_lea.vmem %s3, %s198
      %p200 = scmp.lt.s32.totalorder %s16, 1
      %s201 = scalar_select %p200, %s16, 1
      %s202 = smul.addr %s201, 4
      %s203 = scalar_lea.vmem %s4, %s202
      %v205 = vld [vmem:[%s1] sm:$0xf]
      %v206 = vld [vmem:[%s1 + $0x4] sm:$0xf]
      %v207 = vld [vmem:[%s2] sm:$0xff]
      %v208 = vld [vmem:[%s2 + $0x8] sm:$0xff]
      %v209 = vld [vmem:[%s195] sm:$0xff]
      %v210 = vpack.c.bf16 %v209, %v209
      %212 = vset.pattern.permute.xlu0 0
      %213 = vperm.xlu0 %212, %v207
      %v214 = vpop.permute.xlu0 %213
      %217 = vset.pattern.permute.xlu0 0
      %218 = vperm.xlu0 %217, %v208
      %v219 = vpop.permute.xlu0 %218
      %v223 = vunpack.c.l.b16 %v205
      %v224 = vunpack.c.l.b16 %v206
      %v225 = vpack.c.b16 %v224, %v223
      %vm226 = vcmask 64512
      %v228 = vsel %vm226, %v225, 0
      %vm230 = vcmask 1043456
      %v232 = vsel %vm230, %v210, 0
      %234 = vmatprep.subr.bf16.mxu0 0
      %235 = vmatpush1.bf16.msra.mxu0 0
      %236 = vmatprep.subr.bf16.mxu0 0
      %237 = vmatpush1.bf16.msra.mxu0 0
      %238 = vmatprep.subr.bf16.mxu0 0
      %239 = vmatpush1.bf16.msra.mxu0 0
      %240 = vmatprep.subr.bf16.mxu0 0
      %241 = vmatpush1.bf16.msra.mxu0 0
      %242 = vmatprep.subr.bf16.mxu0 0
      %243 = vmatpush1.bf16.msra.mxu0 0
      %244 = vmatprep.subr.bf16.mxu0 0
      %245 = vmatpush1.bf16.msra.mxu0 0
      %246 = vmatprep.subr.bf16.mxu0 0
      %247 = vmatpush1.bf16.msra.mxu0 0
      %248 = vmatprep.subr.bf16.mxu0 0
      %249 = vmatpush1.bf16.msra.mxu0 %v232
      %250 = vmatprep.subr.bf16.mxu0 0
      %251 = vmatpush2.bf16.msra.mxu0 0
      %252 = vmatprep.subr.bf16.mxu0 0
      %253 = vmatpush2.bf16.msra.mxu0 0
      %254 = vmatprep.subr.bf16.mxu0 0
      %255 = vmatpush2.bf16.msra.mxu0 0
      %256 = vmatprep.subr.bf16.mxu0 0
      %257 = vmatpush2.bf16.msra.mxu0 0
      %258 = vmatprep.subr.bf16.mxu0 0
      %259 = vmatpush2.bf16.msra.mxu0 0
      %260 = vmatprep.subr.bf16.mxu0 0
      %261 = vmatpush2.bf16.msra.mxu0 0
      %262 = vmatprep.subr.bf16.mxu0 0
      %263 = vmatpush2.bf16.msra.mxu0 0
      %264 = vmatprep.subr.bf16.mxu0 0
      %265 = vmatpush2.bf16.msra.mxu0 0
      %266 = vmatprep.mubr.bf16.mxu0 0
      %267 = vmatmul.mubr.bf16.gmra.mxu0 %v228
      %v268 = vpop.f32.mrf.mxu0
      %v269 = vadd.f32 %v214, %v268
      %v270 = vpop.f32.mrf.mxu0
      %v271 = vpop.f32.mrf.mxu0
      %v272 = vadd.f32 %v219, %v271
      %v273 = vpop.f32.mrf.mxu0
      %274 = vdwg.mxu0
      %v275 = vpack.c.bf16 %v269, %v269
      %vm276 = vcmask 257024
      %277 = vst.msk [vmem:[%s199] sm:$0xf] %vm276, %v275
      %v278 = vpack.c.bf16 %v272, %v272
      %279 = vst.msk [vmem:[%s203] sm:$0xf] %vm276, %v278
      %p280 = scmp.lt.s32.totalorder %s16, 1
      %s281 = scalar_select %p280, %s16, 1
      %s282 = smul.addr %s281, 4
      %s283 = scalar_lea.vmem %s3, %s282
      %p284 = scmp.lt.s32.totalorder %s16, 1
      %s285 = scalar_select %p284, %s16, 1
      %s286 = smul.addr %s285, 4
      %s287 = scalar_lea.vmem %s4, %s286
      // Predicated region
      $region33: #{memory_bank_emb_att.2} parent=31 // pred_check
        %p288 = pneg %p102
      $region34: #{memory_bank_emb_att.2} parent=31 // pred_check_branch
        %290 = sbr.rel (%p288) target = $region36
      $region35: #{memory_bank_emb_att.2} parent=31 // pred_region
        _
      $region36: #{memory_bank_emb_att.2} parent=31 // pred_fallthru
        _
      // Predicated region
      $region37: #{memory_bank_emb_att.2} parent=31 // pred_check
        %p291 = pneg %p128
      $region38: #{memory_bank_emb_att.2} parent=31 // pred_check_branch
        %293 = sbr.rel (%p291) target = $region40
      $region39: #{memory_bank_emb_att.2} parent=31 // pred_region
        _
      $region40: #{memory_bank_emb_att.2} parent=31 // pred_fallthru
        _
    $region32: #{memory_bank_emb_att.2} parent=5 // pred_fallthru
      _
    %p294 = scmp.le.s32.totalorder 2, %s11
    // Predicated region
    $region41: #{memory_bank_emb_att.2} parent=5 // pred_check
      %p295 = pneg %p294
    $region42: #{memory_bank_emb_att.2} parent=5 // pred_check_branch
      %297 = sbr.rel (%p295) target = $region44
    $region43: #{memory_bank_emb_att.2} parent=5 // pred_region
      %s298 = ssub.s32 %s11, 2
      // Predicated region
      $region45: #{memory_bank_emb_att.2} parent=43 // pred_check
        %p299 = pneg %p108
      $region46: #{memory_bank_emb_att.2} parent=43 // pred_check_branch
        %301 = sbr.rel (%p299) target = $region48
      $region47: #{memory_bank_emb_att.2} parent=43 // pred_region
        %p302 = scmp.lt.s32.totalorder %s17, 1
        %s303 = scalar_select %p302, %s17, 1
        %s304 = smul.addr %s303, 4
        %s305 = scalar_lea.vmem %s3, %s304
      $region48: #{memory_bank_emb_att.2} parent=43 // pred_fallthru
        _
      // Predicated region
      $region49: #{memory_bank_emb_att.2} parent=43 // pred_check
        %p306 = pneg %p134
      $region50: #{memory_bank_emb_att.2} parent=43 // pred_check_branch
        %308 = sbr.rel (%p306) target = $region52
      $region51: #{memory_bank_emb_att.2} parent=43 // pred_region
        %p309 = scmp.lt.s32.totalorder %s17, 1
        %s310 = scalar_select %p309, %s17, 1
        %s311 = smul.addr %s310, 4
        %s312 = scalar_lea.vmem %s4, %s311
      $region52: #{memory_bank_emb_att.2} parent=43 // pred_fallthru
        _
    $region44: #{memory_bank_emb_att.2} parent=5 // pred_fallthru
      _
  $region6: #{memory_bank_emb_att.2} parent=0 // loop_footer
    %s15 = sadd.s32 1, %s11
  $region7: #{memory_bank_emb_att.2} parent=0 // loop_footer_branch
    %10 = sbr.rel target = $region3
  $region8: #{memory_bank_emb_att.2} parent=0 // loop_exit
    _

// kernel: memory_bank_emb_att.3
$region0: #{memory_bank_emb_att.3}
  #allocation0 [shape = 'u32[]', space=smem, size = 0x4, offset = 0x4, fixed_abs, tag = 'smem constant byte address 0x4 - core index']
  #allocation1 [shape = 'u32[144,128]{1,0:T(1,128)}', space=vmem, size = 0x12000, scoped, tag = 'internal scratch']
  %s0 = inlined_call_operand.vmem [shape: bf16[2,8,32], index: 0, kind: input, shape index: {}]
  %s1 = inlined_call_operand.vmem [shape: bf16[2,8,32], index: 1, kind: input, shape index: {}]
  %s2 = inlined_call_operand.vmem [shape: f32[1,32], index: 2, kind: input, shape index: {}]
  %s3 = inlined_call_operand.vmem [shape: bf16[32,2], index: 3, kind: input, shape index: {}]
  %s4 = inlined_call_operand.vmem [shape: bf16[2,32], index: 4, kind: input, shape index: {}]
  %s5 = inlined_call_operand.vmem [shape: f32[8,1], index: 5, kind: input, shape index: {}]
  %s6 = inlined_call_operand.vmem [shape: f32[8,1], index: 6, kind: input, shape index: {}]
  %s7 = inlined_call_operand.hbm [shape: f32[2,8,32], index: 7, kind: output, shape index: {}]
  %s8 = sld [smem:[#allocation0]]
  $region61: #{memory_bank_emb_att.3} parent=0
    _
  %s10 = ssub.s32 1, %s8
  %s11 = scalar_select 0, %s10, %s8
  $region1: #{memory_bank_emb_att.3} parent=0
    #allocation2 [shape = 'u8[8192]{0}', space=vmem, size = 0x2000, scoped, tag = 'output window, operand 0']
    #allocation3 [shape = 's32[2]{0}', space=sflag, size = 0x8, scoped, tag = 'scoped memory for memory_bank_emb_att.3']
    %12 = vsyncpa [#allocation3], 0
    %s13 = scalar_lea.sflag [#allocation3], 1
    %14 = vsyncpa %s13, 0
    loop: start=0, step=1, limit=4
    $region2: #{memory_bank_emb_att.3} parent=1 // loop_pre_header
      _
    $region3: #{memory_bank_emb_att.3} parent=1 // loop_header
      %s16 = sphi 0, %s20
      %p17 = scmp.ge.s32.totalorder %s16, 4
      %s26 = sphi 0, %s28
      %s29 = sphi 0, %s26
      %s30 = sphi 0, %s29
      %s46 = sphi 0, %s30
      %s52 = sphi 0, %s54
      %s55 = sphi 0, %s52
      %s56 = sphi 0, %s55
      %s72 = sphi 0, %s56
      %s76 = sphi 0, %s76
      %s78 = sphi 0, %s76
      %s79 = sphi 0, %s78
      %s93 = sphi 0, %s79
      %s97 = sphi 0, %s97
      %s99 = sphi 0, %s97
      %s100 = sphi 0, %s99
      %s114 = sphi 0, %s100
      %s118 = sphi 0, %s118
      %s120 = sphi 0, %s118
      %s121 = sphi 0, %s120
      %s135 = sphi 0, %s121
      %s139 = sphi 0, %s139
      %s141 = sphi 0, %s139
      %s142 = sphi 0, %s141
      %s156 = sphi 0, %s142
      %s160 = sphi 0, %s160
      %s162 = sphi 0, %s160
      %s163 = sphi 0, %s162
      %s177 = sphi 0, %s163
      %s183 = sphi 0, %s185
      %s186 = sphi 0, %s183
      %s187 = sphi 0, %s186
      %s203 = sphi 0, %s187
    $region4: #{memory_bank_emb_att.3} parent=1 // loop_header_branch
      %19 = sbr.rel (%p17) target = $region8
    $region5: #{memory_bank_emb_att.3} parent=1 // loop_body
      %s21 = ssub.s32 %s16, 1
      %s22 = ssub.s32 %s16, 2
      %s23 = sadd.s32 %s16, 1
      %s24 = ssub.s32 %s16, %s23
      %p25 = scmp.eq.s32.totalorder %s24, 0
      %s27 = sadd.s32 %s26, 1
      %s28 = scalar_select %p25, %s26, %s27
      %p31 = pneg %p25
      %p32 = scmp.eq.s32.totalorder %s16, 1
      %p33 = por %p31, %p32
      %p34 = scmp.ne.s32.totalorder %s26, %s29
      %p35 = scmp.eq.s32.totalorder %s16, 0
      %p36 = por %p34, %p35
      %p37 = scmp.ne.s32.totalorder %s26, %s29
      %p38 = scmp.eq.s32.totalorder %s21, 1
      %p39 = por %p37, %p38
      %p40 = scmp.ne.s32.totalorder %s29, %s30
      %p41 = scmp.eq.s32.totalorder %s21, 0
      %p42 = por %p40, %p41
      %p43 = scmp.ne.s32.totalorder %s29, %s30
      %p44 = scmp.eq.s32.totalorder %s22, 1
      %p45 = por %p43, %p44
      %p47 = scmp.ne.s32.totalorder %s30, %s46
      %p48 = scmp.eq.s32.totalorder %s22, 0
      %p49 = por %p47, %p48
      %s50 = ssub.s32 %s16, %s23
      %p51 = scmp.eq.s32.totalorder %s50, 0
      %s53 = sadd.s32 %s52, 1
      %s54 = scalar_select %p51, %s52, %s53
      %p57 = pneg %p51
      %p58 = scmp.eq.s32.totalorder %s16, 1
      %p59 = por %p57, %p58
      %p60 = scmp.ne.s32.totalorder %s52, %s55
      %p61 = scmp.eq.s32.totalorder %s16, 0
      %p62 = por %p60, %p61
      %p63 = scmp.ne.s32.totalorder %s52, %s55
      %p64 = scmp.eq.s32.totalorder %s21, 1
      %p65 = por %p63, %p64
      %p66 = scmp.ne.s32.totalorder %s55, %s56
      %p67 = scmp.eq.s32.totalorder %s21, 0
      %p68 = por %p66, %p67
      %p69 = scmp.ne.s32.totalorder %s55, %s56
      %p70 = scmp.eq.s32.totalorder %s22, 1
      %p71 = por %p69, %p70
      %p73 = scmp.ne.s32.totalorder %s56, %s72
      %p74 = scmp.eq.s32.totalorder %s22, 0
      %p75 = por %p73, %p74
      %s77 = sadd.s32 %s76, 1
      %p80 = scmp.eq.s32.totalorder %s16, 1
      %p81 = scmp.ne.s32.totalorder %s76, %s78
      %p82 = scmp.eq.s32.totalorder %s16, 0
      %p83 = por %p81, %p82
      %p84 = scmp.ne.s32.totalorder %s76, %s78
      %p85 = scmp.eq.s32.totalorder %s21, 1
      %p86 = por %p84, %p85
      %p87 = scmp.ne.s32.totalorder %s78, %s79
      %p88 = scmp.eq.s32.totalorder %s21, 0
      %p89 = por %p87, %p88
      %p90 = scmp.ne.s32.totalorder %s78, %s79
      %p91 = scmp.eq.s32.totalorder %s22, 1
      %p92 = por %p90, %p91
      %p94 = scmp.ne.s32.totalorder %s79, %s93
      %p95 = scmp.eq.s32.totalorder %s22, 0
      %p96 = por %p94, %p95
      %s98 = sadd.s32 %s97, 1
      %p101 = scmp.eq.s32.totalorder %s16, 1
      %p102 = scmp.ne.s32.totalorder %s97, %s99
      %p103 = scmp.eq.s32.totalorder %s16, 0
      %p104 = por %p102, %p103
      %p105 = scmp.ne.s32.totalorder %s97, %s99
      %p106 = scmp.eq.s32.totalorder %s21, 1
      %p107 = por %p105, %p106
      %p108 = scmp.ne.s32.totalorder %s99, %s100
      %p109 = scmp.eq.s32.totalorder %s21, 0
      %p110 = por %p108, %p109
      %p111 = scmp.ne.s32.totalorder %s99, %s100
      %p112 = scmp.eq.s32.totalorder %s22, 1
      %p113 = por %p111, %p112
      %p115 = scmp.ne.s32.totalorder %s100, %s114
      %p116 = scmp.eq.s32.totalorder %s22, 0
      %p117 = por %p115, %p116
      %s119 = sadd.s32 %s118, 1
      %p122 = scmp.eq.s32.totalorder %s16, 1
      %p123 = scmp.ne.s32.totalorder %s118, %s120
      %p124 = scmp.eq.s32.totalorder %s16, 0
      %p125 = por %p123, %p124
      %p126 = scmp.ne.s32.totalorder %s118, %s120
      %p127 = scmp.eq.s32.totalorder %s21, 1
      %p128 = por %p126, %p127
      %p129 = scmp.ne.s32.totalorder %s120, %s121
      %p130 = scmp.eq.s32.totalorder %s21, 0
      %p131 = por %p129, %p130
      %p132 = scmp.ne.s32.totalorder %s120, %s121
      %p133 = scmp.eq.s32.totalorder %s22, 1
      %p134 = por %p132, %p133
      %p136 = scmp.ne.s32.totalorder %s121, %s135
      %p137 = scmp.eq.s32.totalorder %s22, 0
      %p138 = por %p136, %p137
      %s140 = sadd.s32 %s139, 1
      %p143 = scmp.eq.s32.totalorder %s16, 1
      %p144 = scmp.ne.s32.totalorder %s139, %s141
      %p145 = scmp.eq.s32.totalorder %s16, 0
      %p146 = por %p144, %p145
      %p147 = scmp.ne.s32.totalorder %s139, %s141
      %p148 = scmp.eq.s32.totalorder %s21, 1
      %p149 = por %p147, %p148
      %p150 = scmp.ne.s32.totalorder %s141, %s142
      %p151 = scmp.eq.s32.totalorder %s21, 0
      %p152 = por %p150, %p151
      %p153 = scmp.ne.s32.totalorder %s141, %s142
      %p154 = scmp.eq.s32.totalorder %s22, 1
      %p155 = por %p153, %p154
      %p157 = scmp.ne.s32.totalorder %s142, %s156
      %p158 = scmp.eq.s32.totalorder %s22, 0
      %p159 = por %p157, %p158
      %s161 = sadd.s32 %s160, 1
      %p164 = scmp.eq.s32.totalorder %s16, 1
      %p165 = scmp.ne.s32.totalorder %s160, %s162
      %p166 = scmp.eq.s32.totalorder %s16, 0
      %p167 = por %p165, %p166
      %p168 = scmp.ne.s32.totalorder %s160, %s162
      %p169 = scmp.eq.s32.totalorder %s21, 1
      %p170 = por %p168, %p169
      %p171 = scmp.ne.s32.totalorder %s162, %s163
      %p172 = scmp.eq.s32.totalorder %s21, 0
      %p173 = por %p171, %p172
      %p174 = scmp.ne.s32.totalorder %s162, %s163
      %p175 = scmp.eq.s32.totalorder %s22, 1
      %p176 = por %p174, %p175
      %p178 = scmp.ne.s32.totalorder %s163, %s177
      %p179 = scmp.eq.s32.totalorder %s22, 0
      %p180 = por %p178, %p179
      %s181 = ssub.s32 %s16, %s23
      %p182 = scmp.eq.s32.totalorder %s181, 0
      %s184 = sadd.s32 %s183, 1
      %s185 = scalar_select %p182, %s183, %s184
      %p188 = pneg %p182
      %p189 = scmp.eq.s32.totalorder %s16, 1
      %p190 = por %p188, %p189
      %p191 = scmp.ne.s32.totalorder %s183, %s186
      %p192 = scmp.eq.s32.totalorder %s16, 0
      %p193 = por %p191, %p192
      %p194 = scmp.ne.s32.totalorder %s183, %s186
      %p195 = scmp.eq.s32.totalorder %s21, 1
      %p196 = por %p194, %p195
      %p197 = scmp.ne.s32.totalorder %s186, %s187
      %p198 = scmp.eq.s32.totalorder %s21, 0
      %p199 = por %p197, %p198
      %p200 = scmp.ne.s32.totalorder %s186, %s187
      %p201 = scmp.eq.s32.totalorder %s22, 1
      %p202 = por %p200, %p201
      %p204 = scmp.ne.s32.totalorder %s187, %s203
      %p205 = scmp.eq.s32.totalorder %s22, 0
      %p206 = por %p204, %p205
      %p207 = scmp.le.s32.totalorder 1, %s16
      %p208 = scmp.lt.s32.totalorder %s16, 3
      %p209 = pnand %p207, %p208
      %p210 = pneg %p209
      // Predicated region
      $region9: #{memory_bank_emb_att.3} parent=5 // pred_check
        _
      $region10: #{memory_bank_emb_att.3} parent=5 // pred_check_branch
        %212 = sbr.rel (%p209) target = $region12
      $region11: #{memory_bank_emb_att.3} parent=5 // pred_region
        %s213 = ssub.s32 %s16, 1
        // Predicated region
        $region13: #{memory_bank_emb_att.3} parent=11 // pred_check
          %p214 = pneg %p89
        $region14: #{memory_bank_emb_att.3} parent=11 // pred_check_branch
          %216 = sbr.rel (%p214) target = $region16
        $region15: #{memory_bank_emb_att.3} parent=11 // pred_region
          _
        $region16: #{memory_bank_emb_att.3} parent=11 // pred_fallthru
          _
        // Predicated region
        $region17: #{memory_bank_emb_att.3} parent=11 // pred_check
          %p217 = pneg %p110
        $region18: #{memory_bank_emb_att.3} parent=11 // pred_check_branch
          %219 = sbr.rel (%p217) target = $region20
        $region19: #{memory_bank_emb_att.3} parent=11 // pred_region
          _
        $region20: #{memory_bank_emb_att.3} parent=11 // pred_fallthru
          _
        // Predicated region
        $region21: #{memory_bank_emb_att.3} parent=11 // pred_check
          %p220 = pneg %p131
        $region22: #{memory_bank_emb_att.3} parent=11 // pred_check_branch
          %222 = sbr.rel (%p220) target = $region24
        $region23: #{memory_bank_emb_att.3} parent=11 // pred_region
          _
        $region24: #{memory_bank_emb_att.3} parent=11 // pred_fallthru
          _
        // Predicated region
        $region25: #{memory_bank_emb_att.3} parent=11 // pred_check
          %p223 = pneg %p152
        $region26: #{memory_bank_emb_att.3} parent=11 // pred_check_branch
          %225 = sbr.rel (%p223) target = $region28
        $region27: #{memory_bank_emb_att.3} parent=11 // pred_region
          _
        $region28: #{memory_bank_emb_att.3} parent=11 // pred_fallthru
          _
        // Predicated region
        $region29: #{memory_bank_emb_att.3} parent=11 // pred_check
          %p226 = pneg %p173
        $region30: #{memory_bank_emb_att.3} parent=11 // pred_check_branch
          %228 = sbr.rel (%p226) target = $region32
        $region31: #{memory_bank_emb_att.3} parent=11 // pred_region
          _
        $region32: #{memory_bank_emb_att.3} parent=11 // pred_fallthru
          _
      $region12: #{memory_bank_emb_att.3} parent=5 // pred_fallthru
        _
      %p229 = scmp.lt.s32.totalorder %s16, 2
      // Predicated region
      $region33: #{memory_bank_emb_att.3} parent=5 // pred_check
        %p230 = pneg %p229
      $region34: #{memory_bank_emb_att.3} parent=5 // pred_check_branch
        %232 = sbr.rel (%p230) target = $region36
      $region35: #{memory_bank_emb_att.3} parent=5 // pred_region
        // Predicated region
        $region37: #{memory_bank_emb_att.3} parent=35 // pred_check
          %p233 = pneg %p36
        $region38: #{memory_bank_emb_att.3} parent=35 // pred_check_branch
          %235 = sbr.rel (%p233) target = $region40
        $region39: #{memory_bank_emb_att.3} parent=35 // pred_region
          %p236 = scmp.lt.s32.totalorder %s16, 1
          %s237 = scalar_select %p236, %s16, 1
          %s238 = smul.addr %s237, 4
          %s239 = scalar_lea.vmem %s0, %s238
        $region40: #{memory_bank_emb_att.3} parent=35 // pred_fallthru
          _
        // Predicated region
        $region41: #{memory_bank_emb_att.3} parent=35 // pred_check
          %p240 = pneg %p62
        $region42: #{memory_bank_emb_att.3} parent=35 // pred_check_branch
          %242 = sbr.rel (%p240) target = $region44
        $region43: #{memory_bank_emb_att.3} parent=35 // pred_region
          %p243 = scmp.lt.s32.totalorder %s16, 1
          %s244 = scalar_select %p243, %s16, 1
          %s245 = smul.addr %s244, 4
          %s246 = scalar_lea.vmem %s1, %s245
        $region44: #{memory_bank_emb_att.3} parent=35 // pred_fallthru
          _
      $region36: #{memory_bank_emb_att.3} parent=5 // pred_fallthru
        _
      %p247 = scmp.le.s32.totalorder 1, %s16
      %p248 = scmp.lt.s32.totalorder %s16, 3
      %p249 = pnand %p247, %p248
      %p250 = pneg %p249
      // Predicated region
      $region45: #{memory_bank_emb_att.3} parent=5 // pred_check
        _
      $region46: #{memory_bank_emb_att.3} parent=5 // pred_check_branch
        %252 = sbr.rel (%p249) target = $region48
      $region47: #{memory_bank_emb_att.3} parent=5 // pred_region
        %s253 = ssub.s32 %s16, 1
        %p254 = scmp.lt.s32.totalorder %s21, 1
        %s255 = scalar_select %p254, %s21, 1
        %s256 = smul.addr %s255, 4
        %s257 = scalar_lea.vmem %s0, %s256
        %p258 = pneg %p42
        %p259 = pneg %p39
        %p260 = scmp.lt.s32.totalorder %s21, 1
        %s261 = scalar_select %p260, %s21, 1
        %s262 = smul.addr %s261, 4
        %s263 = scalar_lea.vmem %s1, %s262
        %p264 = pneg %p68
        %p265 = pneg %p65
        %p266 = pneg %p89
        %p267 = pneg %p86
        %p268 = pneg %p110
        %p269 = pneg %p107
        %p270 = pneg %p131
        %p271 = pneg %p128
        %p272 = pneg %p152
        %p273 = pneg %p149
        %p274 = pneg %p173
        %p275 = pneg %p170
        %p276 = pneg %p199
        %p277 = pneg %p196
        %s278 = sand.u32 %s186, 1
        %s279 = scalar_lea.sflag [#allocation3], %s278
        %s280 = sand.u32 %s186, 1
        %s281 = smul.addr %s280, 8
        %s282 = scalar_lea.vmem [#allocation2], %s281
        %p283 = scmp.lt.s32.totalorder %s21, 1
        %s284 = scalar_select %p283, %s21, 1
        %s285 = smul.addr %s284, 4
        %s286 = scalar_lea.vmem %s0, %s285
        %p287 = scmp.lt.s32.totalorder %s21, 1
        %s288 = scalar_select %p287, %s21, 1
        %s289 = smul.addr %s288, 4
        %s290 = scalar_lea.vmem %s1, %s289
        %v292 = vld [vmem:[%s2] sm:$0x1]
        %v293 = vld [vmem:[%s3] sm:$0xf]
        %v294 = vld [vmem:[%s3 + $0x4] sm:$0xf]
        %v295 = vld [vmem:[%s3 + $0x8] sm:$0xf]
        %v296 = vld [vmem:[%s3 + $0xc] sm:$0xf]
        %v297 = vld [vmem:[%s4] sm:$0x1]
        %v298 = vld [vmem:[%s5] sm:$0xff]
        %v299 = vld [vmem:[%s6] sm:$0xff]
        %v300 = vld [vmem:[%s286] sm:$0xf]
        %v301 = vld [vmem:[%s290] sm:$0xf]
        %v302 = vunpack.c.l.bf16 %v301
        %v303 = vunpack.c.l.bf16 %v300
        %v305 = vlaneseq
        %v306 = vshrl.u32 %v305, 7
        %v307 = vsub.s32 0, %v306
        %v308 = vrot.slane %v292, %v307
        %v310 = vmul.f32 %v303, %v308
        %v311 = vpack.c.bf16 %v310, %v310
        %v316 = vunpack.c.l.b16 %v293
        %v317 = vunpack.c.l.b16 %v294
        %v318 = vunpack.c.l.b16 %v295
        %v319 = vunpack.c.l.b16 %v296
        %v320 = vpack.c.b16 %v317, %v316
        %v321 = vpack.c.b16 %v319, %v318
        %vm324 = vcmask 261120
        %v326 = vsel %vm324, %v311, 0
        %328 = vmatprep.subr.bf16.mxu0 0
        %329 = vmatpush1.bf16.msra.mxu0 0
        %330 = vmatprep.subr.bf16.mxu0 0
        %331 = vmatpush1.bf16.msra.mxu0 0
        %332 = vmatprep.subr.bf16.mxu0 0
        %333 = vmatpush1.bf16.msra.mxu0 0
        %334 = vmatprep.subr.bf16.mxu0 0
        %335 = vmatpush1.bf16.msra.mxu0 0
        %336 = vmatprep.subr.bf16.mxu0 0
        %337 = vmatpush1.bf16.msra.mxu0 0
        %338 = vmatprep.subr.bf16.mxu0 0
        %339 = vmatpush1.bf16.msra.mxu0 0
        %340 = vmatprep.subr.bf16.mxu0 0
        %341 = vmatpush1.bf16.msra.mxu0 %v321
        %342 = vmatprep.subr.bf16.mxu0 0
        %343 = vmatpush1.bf16.msra.mxu0 %v320
        %344 = vmatprep.subr.bf16.mxu0 0
        %345 = vmatpush2.bf16.msra.mxu0 0
        %346 = vmatprep.subr.bf16.mxu0 0
        %347 = vmatpush2.bf16.msra.mxu0 0
        %348 = vmatprep.subr.bf16.mxu0 0
        %349 = vmatpush2.bf16.msra.mxu0 0
        %350 = vmatprep.subr.bf16.mxu0 0
        %351 = vmatpush2.bf16.msra.mxu0 0
        %352 = vmatprep.subr.bf16.mxu0 0
        %353 = vmatpush2.bf16.msra.mxu0 0
        %354 = vmatprep.subr.bf16.mxu0 0
        %355 = vmatpush2.bf16.msra.mxu0 0
        %356 = vmatprep.subr.bf16.mxu0 0
        %357 = vmatpush2.bf16.msra.mxu0 0
        %358 = vmatprep.subr.bf16.mxu0 0
        %359 = vmatpush2.bf16.msra.mxu0 0
        %360 = vmatprep.mubr.bf16.mxu0 0
        %361 = vmatmul.mubr.bf16.gmra.mxu0 %v326
        %v362 = vpop.f32.mrf.mxu0
        %v363 = vadd.f32 0.0, %v362
        %v364 = vpop.f32.mrf.mxu0
        %v365 = vpop.f32.mrf.mxu0
        %v366 = vpop.f32.mrf.mxu0
        %367 = vdwg.mxu0
        %vm368 = vcmask 15360
        %v369 = vsel %vm368, %v363, -inf
        %v370 = vrot.slane %v369, 4
        %v371 = vmax.f32 %v369, %v370
        %v372 = vrot.slane %v371, 2
        %v373 = vmax.f32 %v371, %v372
        %v374 = vrot.slane %v373, 1
        %v375 = vmax.f32 %v373, %v374
        %v376 = vsub.f32 %v363, %v375
        %v377 = vmul.f32 %v376, 1.442695
        %v378 = vpow.pop %v377
        %v379 = vsel %vm368, %v378, 0.0
        %v380 = vrot.slane %v379, 4
        %v381 = vadd.f32 %v379, %v380
        %v382 = vrot.slane %v381, 2
        %v383 = vadd.f32 %v381, %v382
        %v384 = vrot.slane %v383, 1
        %v385 = vadd.f32 %v383, %v384
        %v386 = vrcp.pop %v385
        %v387 = vmul.f32 %v378, %v386
        %v388 = vpack.c.bf16 %v387, %v387
        %v390 = vsel %vm368, %v388, 0
        %vm392 = vcmask 1040384
        %v394 = vsel %vm392, %v297, 0
        %396 = vmatprep.subr.bf16.mxu0 0
        %397 = vmatpush1.bf16.msra.mxu0 0
        %398 = vmatprep.subr.bf16.mxu0 0
        %399 = vmatpush1.bf16.msra.mxu0 0
        %400 = vmatprep.subr.bf16.mxu0 0
        %401 = vmatpush1.bf16.msra.mxu0 0
        %402 = vmatprep.subr.bf16.mxu0 0
        %403 = vmatpush1.bf16.msra.mxu0 0
        %404 = vmatprep.subr.bf16.mxu0 0
        %405 = vmatpush1.bf16.msra.mxu0 0
        %406 = vmatprep.subr.bf16.mxu0 0
        %407 = vmatpush1.bf16.msra.mxu0 0
        %408 = vmatprep.subr.bf16.mxu0 0
        %409 = vmatpush1.bf16.msra.mxu0 0
        %410 = vmatprep.subr.bf16.mxu0 0
        %411 = vmatpush1.bf16.msra.mxu0 %v394
        %412 = vmatprep.subr.bf16.mxu0 0
        %413 = vmatpush2.bf16.msra.mxu0 0
        %414 = vmatprep.subr.bf16.mxu0 0
        %415 = vmatpush2.bf16.msra.mxu0 0
        %416 = vmatprep.subr.bf16.mxu0 0
        %417 = vmatpush2.bf16.msra.mxu0 0
        %418 = vmatprep.subr.bf16.mxu0 0
        %419 = vmatpush2.bf16.msra.mxu0 0
        %420 = vmatprep.subr.bf16.mxu0 0
        %421 = vmatpush2.bf16.msra.mxu0 0
        %422 = vmatprep.subr.bf16.mxu0 0
        %423 = vmatpush2.bf16.msra.mxu0 0
        %424 = vmatprep.subr.bf16.mxu0 0
        %425 = vmatpush2.bf16.msra.mxu0 0
        %426 = vmatprep.subr.bf16.mxu0 0
        %427 = vmatpush2.bf16.msra.mxu0 0
        %428 = vmatprep.mubr.bf16.mxu0 0
        %429 = vmatmul.mubr.bf16.gmra.mxu0 %v390
        %v430 = vpop.f32.mrf.mxu0
        %v431 = vadd.f32 0.0, %v430
        %v432 = vpop.f32.mrf.mxu0
        %v433 = vpop.f32.mrf.mxu0
        %v434 = vpop.f32.mrf.mxu0
        %435 = vdwg.mxu0
        %v436 = vmul.f32 %v431, %v302
        %v437 = vsel %vm324, %v436, 0.0
        %v438 = vrot.slane %v437, 4
        %v439 = vadd.f32 %v437, %v438
        %v440 = vrot.slane %v439, 2
        %v441 = vadd.f32 %v439, %v440
        %v442 = vrot.slane %v441, 1
        %v443 = vadd.f32 %v441, %v442
        %v444 = vmul.f32 %v443, 0.5
        %v445 = vmul.f32 %v443, 0.70710677
        %vm446 = vcmp.ge.f32.partialorder %v445, 0.0
        %v447 = vsel %vm446, 1.0, -1.0
        %v448 = vand.u32 2147483647, %v445
        %v449 = vmul.f32 %v448, 0.3275911
        %v450 = vadd.f32 %v449, 1.0
        %v451 = vrcp.pop %v450
        %v452 = vmul.f32 1.0, %v451
        %v453 = vmul.f32 %v452, 1.0614054
        %v454 = vadd.f32 %v453, -1.4531521
        %v455 = vmul.f32 %v454, %v452
        %v456 = vadd.f32 %v455, 1.4214138
        %v457 = vmul.f32 %v456, %v452
        %v458 = vadd.f32 %v457, -0.28449672
        %v459 = vmul.f32 %v458, %v452
        %v460 = vadd.f32 %v459, 0.2548296
        %v461 = vmul.f32 %v460, %v452
        %v462 = vsub.f32 0.0, %v448
        %v463 = vmul.f32 %v462, %v448
        %v464 = vmul.f32 %v463, 1.442695
        %v465 = vpow.pop %v464
        %v466 = vmul.f32 %v461, %v465
        %v467 = vsub.f32 1.0, %v466
        %v468 = vmul.f32 %v447, %v467
        %v469 = vadd.f32 %v468, 1.0
        %v470 = vmul.f32 %v444, %v469
        %472 = vset.pattern.permute.xlu0 0
        %473 = vperm.xlu0 %472, %v298
        %v474 = vpop.permute.xlu0 %473
        %v476 = vmul.f32 %v474, %v470
        %478 = vset.pattern.permute.xlu0 0
        %479 = vperm.xlu0 %478, %v299
        %v480 = vpop.permute.xlu0 %479
        %v482 = vadd.f32 %v476, %v480
        %483 = vst.msk [vmem:[%s282] sm:$0xff] %vm324, %v482
        %s484 = sand.u32 %s186, 1
        %s485 = scalar_lea.sflag [#allocation3], %s484
        %s486 = sand.u32 %s186, 1
        %s487 = smul.addr %s486, 8
        %s488 = scalar_lea.vmem [#allocation2], %s487
        // Predicated region
        $region49: #{memory_bank_emb_att.3} parent=47 // pred_check
          %p489 = pneg %p196
        $region50: #{memory_bank_emb_att.3} parent=47 // pred_check_branch
          %491 = sbr.rel (%p489) target = $region52
        $region51: #{memory_bank_emb_att.3} parent=47 // pred_region
          %s493 = ssub.s32 128, 128
          %494 = vsyncadd %s485, %s493
          %s495 = smul.addr %s21, 128
          %s496 = scalar_lea.hbm %s7, %s495
          %s498 = sshll.u32 %s488, 4
          %s499 = int_to_ptr.vmem [resolvable:$true] %s498
          %501 = dma.vmem_to_hbm [thread:$0]  %s499, 128, %s496, %s485
        $region52: #{memory_bank_emb_att.3} parent=47 // pred_fallthru
          _
      $region48: #{memory_bank_emb_att.3} parent=5 // pred_fallthru
        _
      %p502 = scmp.le.s32.totalorder 2, %s16
      // Predicated region
      $region53: #{memory_bank_emb_att.3} parent=5 // pred_check
        %p503 = pneg %p502
      $region54: #{memory_bank_emb_att.3} parent=5 // pred_check_branch
        %505 = sbr.rel (%p503) target = $region56
      $region55: #{memory_bank_emb_att.3} parent=5 // pred_region
        %s506 = ssub.s32 %s16, 2
        // Predicated region
        $region57: #{memory_bank_emb_att.3} parent=55 // pred_check
          %p507 = pneg %p202
        $region58: #{memory_bank_emb_att.3} parent=55 // pred_check_branch
          %509 = sbr.rel (%p507) target = $region60
        $region59: #{memory_bank_emb_att.3} parent=55 // pred_region
          %s510 = sand.u32 %s187, 1
          %s511 = scalar_lea.sflag [#allocation3], %s510
          %s512 = sand.u32 %s187, 1
          %s513 = smul.addr %s512, 8
          %s514 = scalar_lea.vmem [#allocation2], %s513
          %515 = dma.done %s511, 128
        $region60: #{memory_bank_emb_att.3} parent=55 // pred_fallthru
          _
      $region56: #{memory_bank_emb_att.3} parent=5 // pred_fallthru
        _
    $region6: #{memory_bank_emb_att.3} parent=1 // loop_footer
      %s20 = sadd.s32 1, %s16
    $region7: #{memory_bank_emb_att.3} parent=1 // loop_footer_branch
      %15 = sbr.rel target = $region3
    $region8: #{memory_bank_emb_att.3} parent=1 // loop_exit
      _
    %516 = vsyncpa [#allocation3], 1
    %s517 = scalar_lea.sflag [#allocation3], 1
    %518 = vsyncpa %s517, 1

</llo_original>
